<compile_context>
chip_gen: v6e
topology: v6e:2x2x1
jax: 0.10.0
libtpu: 0.0.40
codegen_flags: <defaults>
</compile_context>

<pallas_src>
import jax
import jax.numpy as jnp
from jax.experimental import pallas as pl
from jax.experimental.pallas import tpu as pltpu

# Titanic tabular features — train_x.shape[1]; pick a small, fixed value.
NUM_FEATURES = 8
HIDDEN = (64, 32, 16)
TILE_B = 256  # batch tile on the lane axis (multiple of 128)


def mlp_kernel(x_ref, w1_ref, b1_ref, w2_ref, b2_ref, w3_ref, b3_ref,
               w4_ref, b4_ref, o_ref):
    x = x_ref[...]                                                     # [F, TB]

    # Layer 1: Linear(F, 64) + ReLU        (W stored PyTorch-style [out, in])
    h = jnp.dot(w1_ref[...], x, preferred_element_type=jnp.float32) + b1_ref[...]
    h = jnp.maximum(h, 0.0)                                            # [64, TB]

    # Layer 2: Linear(64, 32) + ReLU
    h = jnp.dot(w2_ref[...], h, preferred_element_type=jnp.float32) + b2_ref[...]
    h = jnp.maximum(h, 0.0)                                            # [32, TB]

    # Layer 3: Linear(32, 16) + ReLU
    h = jnp.dot(w3_ref[...], h, preferred_element_type=jnp.float32) + b3_ref[...]
    h = jnp.maximum(h, 0.0)                                            # [16, TB]

    # Layer 4: Linear(16, 1).  N=1 matmul is a terrible MXU shape, so do it as
    # an elementwise multiply (VPU) + sublane reduce (XLU); result stays
    # lane-dense [1, TB].
    z = jnp.sum(h * w4_ref[...], axis=0, keepdims=True) + b4_ref[...]  # [1, TB]

    # Sigmoid: exp + reciprocal go to the otherwise-idle EUP.
    o_ref[...] = jax.nn.sigmoid(z).astype(o_ref.dtype)


def mlp_forward(x, params, *, tile_b=TILE_B):
    """x: [B, F] float32. params: PyTorch-layout (W[out,in], b[out]) per layer.

    Returns [B, 1] float32, matching nn.Sequential(..., nn.Sigmoid()).forward.
    """
    w1, b1, w2, b2, w3, b3, w4, b4 = params
    B, F = x.shape
    n_tiles = pl.cdiv(B, tile_b)
    Bp = n_tiles * tile_b

    # Lane-dense, feature-major input: [F, Bp] (zero-pad the batch tail).
    x_t = jnp.zeros((F, Bp), x.dtype).at[:, :B].set(x.T)

    # Kernel-side layouts: weights [out, in]; biases as [out, 1] columns
    # (broadcast over lanes); final layer as a [16, 1] column for the
    # VPU/XLU path.
    args = (
        x_t,
        w1, b1.reshape(-1, 1),
        w2, b2.reshape(-1, 1),
        w3, b3.reshape(-1, 1),
        w4.reshape(-1, 1), b4.reshape(1, 1),
    )

    def resident_spec(a):
        # Constant block index: weights/biases stay resident across the grid.
        # (Function call binds `a` eagerly — no late-binding closure bug.)
        return pl.BlockSpec(a.shape, lambda i: (0, 0))

    in_specs = [pl.BlockSpec((F, tile_b), lambda i: (0, i))]
    in_specs += [resident_spec(a) for a in args[1:]]

    out = pl.pallas_call(
        mlp_kernel,
        out_shape=jax.ShapeDtypeStruct((1, Bp), jnp.float32),
        grid=(n_tiles,),
        in_specs=in_specs,
        out_specs=pl.BlockSpec((1, tile_b), lambda i: (0, i)),
        compiler_params=pltpu.CompilerParams(
            dimension_semantics=("parallel",)),
    )(*args)

    return out[0, :B].reshape(B, 1)


def init_params(key, in_features, hidden):
    """PyTorch nn.Linear-style init: W[out,in], b[out], uniform +/- 1/sqrt(fan_in)."""
    dims = (in_features,) + tuple(hidden) + (1,)
    params = []
    for i in range(len(dims) - 1):
        fan_in, fan_out = dims[i], dims[i + 1]
        key, kw, kb = jax.random.split(key, 3)
        bound = 1.0 / (fan_in ** 0.5)
        w = jax.random.uniform(kw, (fan_out, fan_in), jnp.float32, -bound, bound)
        b = jax.random.uniform(kb, (fan_out,), jnp.float32, -bound, bound)
        params += [w, b]
    return tuple(params)


def reference_forward(x, params):
    w1, b1, w2, b2, w3, b3, w4, b4 = params
    h = jnp.maximum(x @ w1.T + b1, 0.0)
    h = jnp.maximum(h @ w2.T + b2, 0.0)
    h = jnp.maximum(h @ w3.T + b3, 0.0)
    return jax.nn.sigmoid(h @ w4.T + b4)


if __name__ == "__main__":
    key = jax.random.PRNGKey(0)
    params = init_params(key, NUM_FEATURES, HIDDEN)

    # batch=8: small demo (single tile, padded). batch=300: exercises the
    # batch grid (two tiles) plus the ragged-tail padding path.
    for batch in (8, 300):
        key, kx = jax.random.split(key)
        x = jax.random.normal(kx, (batch, NUM_FEATURES), jnp.float32)

        out = jax.block_until_ready(mlp_forward(x, params))
        ref = reference_forward(x, params)

        assert out.shape == (batch, 1), out.shape
        assert jnp.allclose(out, ref, atol=1e-5, rtol=1e-5), (
            float(jnp.max(jnp.abs(out - ref))))

    print("KERNEL_OK")
</pallas_src>

<mosaic_0001>
module attributes {stable_mosaic.version = 11 : i64} {
  func.func @mlp_kernel(%arg0: i32, %arg1: memref<8x256xf32, #tpu.memory_space<vmem>>, %arg2: memref<64x8xf32, #tpu.memory_space<vmem>>, %arg3: memref<64x1xf32, #tpu.memory_space<vmem>>, %arg4: memref<32x64xf32, #tpu.memory_space<vmem>>, %arg5: memref<32x1xf32, #tpu.memory_space<vmem>>, %arg6: memref<16x32xf32, #tpu.memory_space<vmem>>, %arg7: memref<16x1xf32, #tpu.memory_space<vmem>>, %arg8: memref<16x1xf32, #tpu.memory_space<vmem>>, %arg9: memref<1x1xf32, #tpu.memory_space<vmem>>, %arg10: memref<1x256xf32, #tpu.memory_space<vmem>>) attributes {dimension_semantics = [#tpu.dimension_semantics<parallel>], iteration_bounds = array<i64: 1>, scalar_prefetch = 0 : i64, scratch_operands = 0 : i64, tpu.core_type = #tpu.core_type<tc>, window_params = [{transform_indices = @transform_0, window_bounds = array<i64: 8, 256>}, {pipeline_mode = #tpu.pipeline_mode<synchronous>, transform_indices = @transform_1, window_bounds = array<i64: 64, 8>}, {pipeline_mode = #tpu.pipeline_mode<synchronous>, transform_indices = @transform_2, window_bounds = array<i64: 64, 1>}, {pipeline_mode = #tpu.pipeline_mode<synchronous>, transform_indices = @transform_3, window_bounds = array<i64: 32, 64>}, {pipeline_mode = #tpu.pipeline_mode<synchronous>, transform_indices = @transform_4, window_bounds = array<i64: 32, 1>}, {pipeline_mode = #tpu.pipeline_mode<synchronous>, transform_indices = @transform_5, window_bounds = array<i64: 16, 32>}, {pipeline_mode = #tpu.pipeline_mode<synchronous>, transform_indices = @transform_6, window_bounds = array<i64: 16, 1>}, {pipeline_mode = #tpu.pipeline_mode<synchronous>, transform_indices = @transform_7, window_bounds = array<i64: 16, 1>}, {pipeline_mode = #tpu.pipeline_mode<synchronous>, transform_indices = @transform_8, window_bounds = array<i64: 1, 1>}, {transform_indices = @transform_9, window_bounds = array<i64: 1, 256>}]} {
    %c0 = arith.constant 0 : index
    %c0_0 = arith.constant 0 : index
    %0 = vector.load %arg1[%c0, %c0_0] : memref<8x256xf32, #tpu.memory_space<vmem>>, vector<8x256xf32>
    %c0_1 = arith.constant 0 : index
    %c0_2 = arith.constant 0 : index
    %1 = vector.load %arg2[%c0_1, %c0_2] : memref<64x8xf32, #tpu.memory_space<vmem>>, vector<64x8xf32>
    %cst = arith.constant dense<0.000000e+00> : vector<64x256xf32>
    %2 = tpu.matmul %1, %0, %cst {dimension_numbers = #tpu.dot_dimension_numbers<[1], [0], [0], [1], [0, 0, 1, 1], [], []>} : vector<64x8xf32>, vector<8x256xf32>, vector<64x256xf32> -> vector<64x256xf32>
    %c0_3 = arith.constant 0 : index
    %c0_4 = arith.constant 0 : index
    %3 = vector.load %arg3[%c0_3, %c0_4] : memref<64x1xf32, #tpu.memory_space<vmem>>, vector<64x1xf32>
    %4 = vector.broadcast %3 : vector<64x1xf32> to vector<64x256xf32>
    %5 = arith.addf %2, %4 : vector<64x256xf32>
    %cst_5 = arith.constant 0.000000e+00 : f32
    %6 = vector.broadcast %cst_5 : f32 to vector<64x256xf32>
    %7 = arith.maximumf %5, %6 : vector<64x256xf32>
    %c0_6 = arith.constant 0 : index
    %c0_7 = arith.constant 0 : index
    %8 = vector.load %arg4[%c0_6, %c0_7] : memref<32x64xf32, #tpu.memory_space<vmem>>, vector<32x64xf32>
    %cst_8 = arith.constant dense<0.000000e+00> : vector<32x256xf32>
    %9 = tpu.matmul %8, %7, %cst_8 {dimension_numbers = #tpu.dot_dimension_numbers<[1], [0], [0], [1], [0, 0, 1, 1], [], []>} : vector<32x64xf32>, vector<64x256xf32>, vector<32x256xf32> -> vector<32x256xf32>
    %c0_9 = arith.constant 0 : index
    %c0_10 = arith.constant 0 : index
    %10 = vector.load %arg5[%c0_9, %c0_10] : memref<32x1xf32, #tpu.memory_space<vmem>>, vector<32x1xf32>
    %11 = vector.broadcast %10 : vector<32x1xf32> to vector<32x256xf32>
    %12 = arith.addf %9, %11 : vector<32x256xf32>
    %cst_11 = arith.constant 0.000000e+00 : f32
    %13 = vector.broadcast %cst_11 : f32 to vector<32x256xf32>
    %14 = arith.maximumf %12, %13 : vector<32x256xf32>
    %c0_12 = arith.constant 0 : index
    %c0_13 = arith.constant 0 : index
    %15 = vector.load %arg6[%c0_12, %c0_13] : memref<16x32xf32, #tpu.memory_space<vmem>>, vector<16x32xf32>
    %cst_14 = arith.constant dense<0.000000e+00> : vector<16x256xf32>
    %16 = tpu.matmul %15, %14, %cst_14 {dimension_numbers = #tpu.dot_dimension_numbers<[1], [0], [0], [1], [0, 0, 1, 1], [], []>} : vector<16x32xf32>, vector<32x256xf32>, vector<16x256xf32> -> vector<16x256xf32>
    %c0_15 = arith.constant 0 : index
    %c0_16 = arith.constant 0 : index
    %17 = vector.load %arg7[%c0_15, %c0_16] : memref<16x1xf32, #tpu.memory_space<vmem>>, vector<16x1xf32>
    %18 = vector.broadcast %17 : vector<16x1xf32> to vector<16x256xf32>
    %19 = arith.addf %16, %18 : vector<16x256xf32>
    %cst_17 = arith.constant 0.000000e+00 : f32
    %20 = vector.broadcast %cst_17 : f32 to vector<16x256xf32>
    %21 = arith.maximumf %19, %20 : vector<16x256xf32>
    %c0_18 = arith.constant 0 : index
    %c0_19 = arith.constant 0 : index
    %22 = vector.load %arg8[%c0_18, %c0_19] : memref<16x1xf32, #tpu.memory_space<vmem>>, vector<16x1xf32>
    %23 = vector.broadcast %22 : vector<16x1xf32> to vector<16x256xf32>
    %24 = arith.mulf %21, %23 : vector<16x256xf32>
    %cst_20 = arith.constant dense<0.000000e+00> : vector<256xf32>
    %25 = vector.multi_reduction <add>, %24, %cst_20 [0] : vector<16x256xf32> to vector<256xf32>
    %26 = vector.shape_cast %25 : vector<256xf32> to vector<1x256xf32>
    %c0_21 = arith.constant 0 : index
    %c0_22 = arith.constant 0 : index
    %27 = vector.load %arg9[%c0_21, %c0_22] : memref<1x1xf32, #tpu.memory_space<vmem>>, vector<1x1xf32>
    %28 = vector.broadcast %27 : vector<1x1xf32> to vector<1x256xf32>
    %29 = arith.addf %26, %28 : vector<1x256xf32>
    %30 = arith.negf %29 : vector<1x256xf32>
    %31 = math.exp %30 : vector<1x256xf32>
    %cst_23 = arith.constant 1.000000e+00 : f32
    %32 = vector.broadcast %cst_23 : f32 to vector<1x256xf32>
    %33 = arith.addf %32, %31 : vector<1x256xf32>
    %34 = arith.divf %32, %33 : vector<1x256xf32>
    %c0_24 = arith.constant 0 : index
    %c0_25 = arith.constant 0 : index
    %35 = vector.load %arg10[%c0_24, %c0_25] : memref<1x256xf32, #tpu.memory_space<vmem>>, vector<1x256xf32>
    tpu.vector_store %arg10[%c0_24, %c0_25], %34 {strides = array<i32>} : memref<1x256xf32, #tpu.memory_space<vmem>>, vector<1x256xf32>,
    return
  }
  func.func @transform_0(%arg0: i32) -> (i32, i32) {
    %c0_i32 = arith.constant 0 : i32
    %c0_i32_0 = arith.constant 0 : i32
    return %c0_i32, %arg0 : i32, i32
  }
  func.func @transform_1(%arg0: i32) -> (i32, i32) {
    %c0_i32 = arith.constant 0 : i32
    %c0_i32_0 = arith.constant 0 : i32
    %c0_i32_1 = arith.constant 0 : i32
    return %c0_i32, %c0_i32_0 : i32, i32
  }
  func.func @transform_2(%arg0: i32) -> (i32, i32) {
    %c0_i32 = arith.constant 0 : i32
    %c0_i32_0 = arith.constant 0 : i32
    %c0_i32_1 = arith.constant 0 : i32
    return %c0_i32, %c0_i32_0 : i32, i32
  }
  func.func @transform_3(%arg0: i32) -> (i32, i32) {
    %c0_i32 = arith.constant 0 : i32
    %c0_i32_0 = arith.constant 0 : i32
    %c0_i32_1 = arith.constant 0 : i32
    return %c0_i32, %c0_i32_0 : i32, i32
  }
  func.func @transform_4(%arg0: i32) -> (i32, i32) {
    %c0_i32 = arith.constant 0 : i32
    %c0_i32_0 = arith.constant 0 : i32
    %c0_i32_1 = arith.constant 0 : i32
    return %c0_i32, %c0_i32_0 : i32, i32
  }
  func.func @transform_5(%arg0: i32) -> (i32, i32) {
    %c0_i32 = arith.constant 0 : i32
    %c0_i32_0 = arith.constant 0 : i32
    %c0_i32_1 = arith.constant 0 : i32
    return %c0_i32, %c0_i32_0 : i32, i32
  }
  func.func @transform_6(%arg0: i32) -> (i32, i32) {
    %c0_i32 = arith.constant 0 : i32
    %c0_i32_0 = arith.constant 0 : i32
    %c0_i32_1 = arith.constant 0 : i32
    return %c0_i32, %c0_i32_0 : i32, i32
  }
  func.func @transform_7(%arg0: i32) -> (i32, i32) {
    %c0_i32 = arith.constant 0 : i32
    %c0_i32_0 = arith.constant 0 : i32
    %c0_i32_1 = arith.constant 0 : i32
    return %c0_i32, %c0_i32_0 : i32, i32
  }
  func.func @transform_8(%arg0: i32) -> (i32, i32) {
    %c0_i32 = arith.constant 0 : i32
    %c0_i32_0 = arith.constant 0 : i32
    %c0_i32_1 = arith.constant 0 : i32
    return %c0_i32, %c0_i32_0 : i32, i32
  }
  func.func @transform_9(%arg0: i32) -> (i32, i32) {
    %c0_i32 = arith.constant 0 : i32
    %c0_i32_0 = arith.constant 0 : i32
    return %c0_i32, %arg0 : i32, i32
  }
}

</mosaic_0001>

<llo_original>
// kernel: tpu_custom_call.1
$region0: #{tpu_custom_call.1}
  #allocation0 [shape = 'u32[]', space=smem, size = 0x4, offset = 0x4, fixed_abs, tag = 'smem constant byte address 0x4 - core index']
  #allocation1 [shape = 'u32[144,128]{1,0:T(1,128)}', space=vmem, size = 0x12000, scoped, tag = 'internal scratch']
  #allocation2 [shape = 'f32[1,1]{1,0:T(1,128)S(1)}', space=vmem, size = 0x200, scoped, tag = 'scoped memory for tpu_custom_call.1']
  %s0 = inlined_call_operand.vmem [shape: f32[8,256], index: 0, kind: input, shape index: {}]
  %s1 = inlined_call_operand.vmem [shape: f32[64,8], index: 1, kind: input, shape index: {}]
  %s2 = inlined_call_operand.vmem [shape: f32[64,1], index: 2, kind: input, shape index: {}]
  %s3 = inlined_call_operand.vmem [shape: f32[32,64], index: 3, kind: input, shape index: {}]
  %s4 = inlined_call_operand.vmem [shape: f32[32,1], index: 4, kind: input, shape index: {}]
  %s5 = inlined_call_operand.vmem [shape: f32[16,32], index: 5, kind: input, shape index: {}]
  %s6 = inlined_call_operand.vmem [shape: f32[16,1], index: 6, kind: input, shape index: {}]
  %s7 = inlined_call_operand.vmem [shape: f32[16,1], index: 7, kind: input, shape index: {}]
  %s8 = inlined_call_operand.<no memory space> [shape: f32[1,1], index: 8, kind: input, shape index: {}]
  %s9 = inlined_call_operand.hbm [shape: f32[1,256], index: 9, kind: output, shape index: {}]
  %s10 = sld [smem:[#allocation0]]
  $region46: #{tpu_custom_call.1} parent=0
    _
  %s12 = ssub.s32 1, %s10
  %s13 = scalar_select 0, %s12, %s10
  %v14 = vstv %s8
  %15 = vst [vmem:[#allocation2] sm:$0x1] %v14
  $region1: #{tpu_custom_call.1} parent=0
    #allocation3 [shape = 'u8[1024]{0}', space=vmem, size = 0x400, scoped, tag = 'output window, operand 0, single buffered']
    #allocation4 [shape = 's32[1]{0}', space=sflag, size = 0x4, scoped, tag = 'scoped memory for tpu_custom_call.1']
    %16 = vsyncpa [#allocation4], 0
    // Predicated region
    $region2: #{tpu_custom_call.1} parent=1 // pred_check
      _
    $region3: #{tpu_custom_call.1} parent=1 // pred_check_branch
      %18 = sbr.rel (0) target = $region5
    $region4: #{tpu_custom_call.1} parent=1 // pred_region
      _
    $region5: #{tpu_custom_call.1} parent=1 // pred_fallthru
      _
    // Predicated region
    $region6: #{tpu_custom_call.1} parent=1 // pred_check
      _
    $region7: #{tpu_custom_call.1} parent=1 // pred_check_branch
      %20 = sbr.rel (0) target = $region9
    $region8: #{tpu_custom_call.1} parent=1 // pred_region
      _
    $region9: #{tpu_custom_call.1} parent=1 // pred_fallthru
      _
    // Predicated region
    $region10: #{tpu_custom_call.1} parent=1 // pred_check
      _
    $region11: #{tpu_custom_call.1} parent=1 // pred_check_branch
      %22 = sbr.rel (0) target = $region13
    $region12: #{tpu_custom_call.1} parent=1 // pred_region
      _
    $region13: #{tpu_custom_call.1} parent=1 // pred_fallthru
      _
    // Predicated region
    $region14: #{tpu_custom_call.1} parent=1 // pred_check
      _
    $region15: #{tpu_custom_call.1} parent=1 // pred_check_branch
      %24 = sbr.rel (0) target = $region17
    $region16: #{tpu_custom_call.1} parent=1 // pred_region
      _
    $region17: #{tpu_custom_call.1} parent=1 // pred_fallthru
      _
    // Predicated region
    $region18: #{tpu_custom_call.1} parent=1 // pred_check
      _
    $region19: #{tpu_custom_call.1} parent=1 // pred_check_branch
      %26 = sbr.rel (0) target = $region21
    $region20: #{tpu_custom_call.1} parent=1 // pred_region
      _
    $region21: #{tpu_custom_call.1} parent=1 // pred_fallthru
      _
    // Predicated region
    $region22: #{tpu_custom_call.1} parent=1 // pred_check
      _
    $region23: #{tpu_custom_call.1} parent=1 // pred_check_branch
      %28 = sbr.rel (0) target = $region25
    $region24: #{tpu_custom_call.1} parent=1 // pred_region
      _
    $region25: #{tpu_custom_call.1} parent=1 // pred_fallthru
      _
    // Predicated region
    $region26: #{tpu_custom_call.1} parent=1 // pred_check
      _
    $region27: #{tpu_custom_call.1} parent=1 // pred_check_branch
      %30 = sbr.rel (0) target = $region29
    $region28: #{tpu_custom_call.1} parent=1 // pred_region
      _
    $region29: #{tpu_custom_call.1} parent=1 // pred_fallthru
      _
    // Predicated region
    $region30: #{tpu_custom_call.1} parent=1 // pred_check
      _
    $region31: #{tpu_custom_call.1} parent=1 // pred_check_branch
      %32 = sbr.rel (0) target = $region33
    $region32: #{tpu_custom_call.1} parent=1 // pred_region
      _
    $region33: #{tpu_custom_call.1} parent=1 // pred_fallthru
      _
    // Predicated region
    $region34: #{tpu_custom_call.1} parent=1 // pred_check
      _
    $region35: #{tpu_custom_call.1} parent=1 // pred_check_branch
      %34 = sbr.rel (0) target = $region37
    $region36: #{tpu_custom_call.1} parent=1 // pred_region
      _
    $region37: #{tpu_custom_call.1} parent=1 // pred_fallthru
      _
    %v35 = vld [vmem:[%s0] sm:$0xff]
    %v36 = vld [vmem:[%s0 + $0x8] sm:$0xff]
    %v37 = vld [vmem:[%s1] sm:$0xff]
    %v38 = vld [vmem:[%s1 + $0x8] sm:$0xff]
    %v39 = vld [vmem:[%s1 + $0x10] sm:$0xff]
    %v40 = vld [vmem:[%s1 + $0x18] sm:$0xff]
    %v41 = vld [vmem:[%s1 + $0x20] sm:$0xff]
    %v42 = vld [vmem:[%s1 + $0x28] sm:$0xff]
    %v43 = vld [vmem:[%s1 + $0x30] sm:$0xff]
    %v44 = vld [vmem:[%s1 + $0x38] sm:$0xff]
    %v45 = vld [vmem:[%s2] sm:$0xff]
    %v46 = vld [vmem:[%s2 + $0x8] sm:$0xff]
    %v47 = vld [vmem:[%s2 + $0x10] sm:$0xff]
    %v48 = vld [vmem:[%s2 + $0x18] sm:$0xff]
    %v49 = vld [vmem:[%s2 + $0x20] sm:$0xff]
    %v50 = vld [vmem:[%s2 + $0x28] sm:$0xff]
    %v51 = vld [vmem:[%s2 + $0x30] sm:$0xff]
    %v52 = vld [vmem:[%s2 + $0x38] sm:$0xff]
    %54 = vset.pattern.permute.xlu0 0
    %55 = vperm.xlu0 %54, %v45
    %v56 = vpop.permute.xlu0 %55
    %59 = vset.pattern.permute.xlu0 0
    %60 = vperm.xlu0 %59, %v46
    %v61 = vpop.permute.xlu0 %60
    %64 = vset.pattern.permute.xlu0 0
    %65 = vperm.xlu0 %64, %v47
    %v66 = vpop.permute.xlu0 %65
    %69 = vset.pattern.permute.xlu0 0
    %70 = vperm.xlu0 %69, %v48
    %v71 = vpop.permute.xlu0 %70
    %74 = vset.pattern.permute.xlu0 0
    %75 = vperm.xlu0 %74, %v49
    %v76 = vpop.permute.xlu0 %75
    %79 = vset.pattern.permute.xlu0 0
    %80 = vperm.xlu0 %79, %v50
    %v81 = vpop.permute.xlu0 %80
    %84 = vset.pattern.permute.xlu0 0
    %85 = vperm.xlu0 %84, %v51
    %v86 = vpop.permute.xlu0 %85
    %89 = vset.pattern.permute.xlu0 0
    %90 = vperm.xlu0 %89, %v52
    %v91 = vpop.permute.xlu0 %90
    %vm93 = vcmask 64512
    %v95 = vsel %vm93, %v37, 0
    %v98 = vsel %vm93, %v38, 0
    %v101 = vsel %vm93, %v39, 0
    %v104 = vsel %vm93, %v40, 0
    %v107 = vsel %vm93, %v41, 0
    %v110 = vsel %vm93, %v42, 0
    %v113 = vsel %vm93, %v43, 0
    %v116 = vsel %vm93, %v44, 0
    %118 = vmatprep.subr.mxu0 0.0
    %119 = vmatpush1.msra.mxu0 0.0
    %120 = vmatprep.subr.mxu0 0.0
    %121 = vmatpush1.msra.mxu0 0.0
    %122 = vmatprep.subr.mxu0 0.0
    %123 = vmatpush1.msra.mxu0 0.0
    %124 = vmatprep.subr.mxu0 0.0
    %125 = vmatpush1.msra.mxu0 0.0
    %126 = vmatprep.subr.mxu0 0.0
    %127 = vmatpush1.msra.mxu0 0.0
    %128 = vmatprep.subr.mxu0 0.0
    %129 = vmatpush1.msra.mxu0 0.0
    %130 = vmatprep.subr.mxu0 0.0
    %131 = vmatpush1.msra.mxu0 0.0
    %132 = vmatprep.subr.mxu0 0.0
    %133 = vmatpush1.msra.mxu0 0.0
    %134 = vmatprep.subr.mxu0 0.0
    %135 = vmatpush1.msra.mxu0 0.0
    %136 = vmatprep.subr.mxu0 0.0
    %137 = vmatpush1.msra.mxu0 0.0
    %138 = vmatprep.subr.mxu0 0.0
    %139 = vmatpush1.msra.mxu0 0.0
    %140 = vmatprep.subr.mxu0 0.0
    %141 = vmatpush1.msra.mxu0 0.0
    %142 = vmatprep.subr.mxu0 0.0
    %143 = vmatpush1.msra.mxu0 0.0
    %144 = vmatprep.subr.mxu0 0.0
    %145 = vmatpush1.msra.mxu0 0.0
    %146 = vmatprep.subr.mxu0 0.0
    %147 = vmatpush1.msra.mxu0 0.0
    %148 = vmatprep.subr.mxu0 %v36
    %149 = vmatpush1.msra.mxu0 %v35
    %150 = vmatprep.subr.mxu0 0.0
    %151 = vmatpush2.msra.mxu0 0.0
    %152 = vmatprep.subr.mxu0 0.0
    %153 = vmatpush2.msra.mxu0 0.0
    %154 = vmatprep.subr.mxu0 0.0
    %155 = vmatpush2.msra.mxu0 0.0
    %156 = vmatprep.subr.mxu0 0.0
    %157 = vmatpush2.msra.mxu0 0.0
    %158 = vmatprep.subr.mxu0 0.0
    %159 = vmatpush2.msra.mxu0 0.0
    %160 = vmatprep.subr.mxu0 0.0
    %161 = vmatpush2.msra.mxu0 0.0
    %162 = vmatprep.subr.mxu0 0.0
    %163 = vmatpush2.msra.mxu0 0.0
    %164 = vmatprep.subr.mxu0 0.0
    %165 = vmatpush2.msra.mxu0 0.0
    %166 = vmatprep.subr.mxu0 0.0
    %167 = vmatpush2.msra.mxu0 0.0
    %168 = vmatprep.subr.mxu0 0.0
    %169 = vmatpush2.msra.mxu0 0.0
    %170 = vmatprep.subr.mxu0 0.0
    %171 = vmatpush2.msra.mxu0 0.0
    %172 = vmatprep.subr.mxu0 0.0
    %173 = vmatpush2.msra.mxu0 0.0
    %174 = vmatprep.subr.mxu0 0.0
    %175 = vmatpush2.msra.mxu0 0.0
    %176 = vmatprep.subr.mxu0 0.0
    %177 = vmatpush2.msra.mxu0 0.0
    %178 = vmatprep.subr.mxu0 0.0
    %179 = vmatpush2.msra.mxu0 0.0
    %180 = vmatprep.subr.mxu0 0.0
    %181 = vmatpush2.msra.mxu0 0.0
    %182 = vmatprep.mubr.f32.mxu0 0.0
    %183 = vmatmul.mubr.f32.gmra.mxu0 %v95
    %v184 = vpop.f32.mrf.mxu0
    %v185 = vadd.f32 %v56, %v184
    %v186 = vpop.f32.mrf.mxu0
    %v187 = vadd.f32 %v56, %v186
    %188 = vmatprep.mubr.f32.mxu0 0.0
    %189 = vmatmul.mubr.f32.gmra.mxu0 %v98
    %v190 = vpop.f32.mrf.mxu0
    %v191 = vadd.f32 %v61, %v190
    %v192 = vpop.f32.mrf.mxu0
    %v193 = vadd.f32 %v61, %v192
    %194 = vmatprep.mubr.f32.mxu0 0.0
    %195 = vmatmul.mubr.f32.gmra.mxu0 %v101
    %v196 = vpop.f32.mrf.mxu0
    %v197 = vadd.f32 %v66, %v196
    %v198 = vpop.f32.mrf.mxu0
    %v199 = vadd.f32 %v66, %v198
    %200 = vmatprep.mubr.f32.mxu0 0.0
    %201 = vmatmul.mubr.f32.gmra.mxu0 %v104
    %v202 = vpop.f32.mrf.mxu0
    %v203 = vadd.f32 %v71, %v202
    %v204 = vpop.f32.mrf.mxu0
    %v205 = vadd.f32 %v71, %v204
    %206 = vmatprep.mubr.f32.mxu0 0.0
    %207 = vmatmul.mubr.f32.gmra.mxu0 %v107
    %v208 = vpop.f32.mrf.mxu0
    %v209 = vadd.f32 %v76, %v208
    %v210 = vpop.f32.mrf.mxu0
    %v211 = vadd.f32 %v76, %v210
    %212 = vmatprep.mubr.f32.mxu0 0.0
    %213 = vmatmul.mubr.f32.gmra.mxu0 %v110
    %v214 = vpop.f32.mrf.mxu0
    %v215 = vadd.f32 %v81, %v214
    %v216 = vpop.f32.mrf.mxu0
    %v217 = vadd.f32 %v81, %v216
    %218 = vmatprep.mubr.f32.mxu0 0.0
    %219 = vmatmul.mubr.f32.gmra.mxu0 %v113
    %v220 = vpop.f32.mrf.mxu0
    %v221 = vadd.f32 %v86, %v220
    %v222 = vpop.f32.mrf.mxu0
    %v223 = vadd.f32 %v86, %v222
    %224 = vmatprep.mubr.f32.mxu0 0.0
    %225 = vmatmul.mubr.f32.gmra.mxu0 %v116
    %v226 = vpop.f32.mrf.mxu0
    %v227 = vadd.f32 %v91, %v226
    %v228 = vpop.f32.mrf.mxu0
    %v229 = vadd.f32 %v91, %v228
    %230 = vdwg.mxu0
    %v231 = vmax.f32 %v185, 0.0
    %v232 = vmax.f32 %v187, 0.0
    %v233 = vmax.f32 %v191, 0.0
    %v234 = vmax.f32 %v193, 0.0
    %v235 = vmax.f32 %v197, 0.0
    %v236 = vmax.f32 %v199, 0.0
    %v237 = vmax.f32 %v203, 0.0
    %v238 = vmax.f32 %v205, 0.0
    %v239 = vmax.f32 %v209, 0.0
    %v240 = vmax.f32 %v211, 0.0
    %v241 = vmax.f32 %v215, 0.0
    %v242 = vmax.f32 %v217, 0.0
    %v243 = vmax.f32 %v221, 0.0
    %v244 = vmax.f32 %v223, 0.0
    %v245 = vmax.f32 %v227, 0.0
    %v246 = vmax.f32 %v229, 0.0
    %v247 = vld [vmem:[%s3] sm:$0xff]
    %v248 = vld [vmem:[%s3 + $0x8] sm:$0xff]
    %v249 = vld [vmem:[%s3 + $0x10] sm:$0xff]
    %v250 = vld [vmem:[%s3 + $0x18] sm:$0xff]
    %v251 = vld [vmem:[%s4] sm:$0xff]
    %v252 = vld [vmem:[%s4 + $0x8] sm:$0xff]
    %v253 = vld [vmem:[%s4 + $0x10] sm:$0xff]
    %v254 = vld [vmem:[%s4 + $0x18] sm:$0xff]
    %256 = vset.pattern.permute.xlu0 0
    %257 = vperm.xlu0 %256, %v251
    %v258 = vpop.permute.xlu0 %257
    %261 = vset.pattern.permute.xlu0 0
    %262 = vperm.xlu0 %261, %v252
    %v263 = vpop.permute.xlu0 %262
    %266 = vset.pattern.permute.xlu0 0
    %267 = vperm.xlu0 %266, %v253
    %v268 = vpop.permute.xlu0 %267
    %271 = vset.pattern.permute.xlu0 0
    %272 = vperm.xlu0 %271, %v254
    %v273 = vpop.permute.xlu0 %272
    %vm275 = vcmask 523264
    %v277 = vsel %vm275, %v247, 0
    %v280 = vsel %vm275, %v248, 0
    %v283 = vsel %vm275, %v249, 0
    %v286 = vsel %vm275, %v250, 0
    %288 = vmatprep.subr.mxu0 0.0
    %289 = vmatpush1.msra.mxu0 0.0
    %290 = vmatprep.subr.mxu0 0.0
    %291 = vmatpush1.msra.mxu0 0.0
    %292 = vmatprep.subr.mxu0 0.0
    %293 = vmatpush1.msra.mxu0 0.0
    %294 = vmatprep.subr.mxu0 0.0
    %295 = vmatpush1.msra.mxu0 0.0
    %296 = vmatprep.subr.mxu0 0.0
    %297 = vmatpush1.msra.mxu0 0.0
    %298 = vmatprep.subr.mxu0 0.0
    %299 = vmatpush1.msra.mxu0 0.0
    %300 = vmatprep.subr.mxu0 0.0
    %301 = vmatpush1.msra.mxu0 0.0
    %302 = vmatprep.subr.mxu0 0.0
    %303 = vmatpush1.msra.mxu0 0.0
    %304 = vmatprep.subr.mxu0 %v246
    %305 = vmatpush1.msra.mxu0 %v245
    %306 = vmatprep.subr.mxu0 %v244
    %307 = vmatpush1.msra.mxu0 %v243
    %308 = vmatprep.subr.mxu0 %v242
    %309 = vmatpush1.msra.mxu0 %v241
    %310 = vmatprep.subr.mxu0 %v240
    %311 = vmatpush1.msra.mxu0 %v239
    %312 = vmatprep.subr.mxu0 %v238
    %313 = vmatpush1.msra.mxu0 %v237
    %314 = vmatprep.subr.mxu0 %v236
    %315 = vmatpush1.msra.mxu0 %v235
    %316 = vmatprep.subr.mxu0 %v234
    %317 = vmatpush1.msra.mxu0 %v233
    %318 = vmatprep.subr.mxu0 %v232
    %319 = vmatpush1.msra.mxu0 %v231
    %320 = vmatprep.subr.mxu0 0.0
    %321 = vmatpush2.msra.mxu0 0.0
    %322 = vmatprep.subr.mxu0 0.0
    %323 = vmatpush2.msra.mxu0 0.0
    %324 = vmatprep.subr.mxu0 0.0
    %325 = vmatpush2.msra.mxu0 0.0
    %326 = vmatprep.subr.mxu0 0.0
    %327 = vmatpush2.msra.mxu0 0.0
    %328 = vmatprep.subr.mxu0 0.0
    %329 = vmatpush2.msra.mxu0 0.0
    %330 = vmatprep.subr.mxu0 0.0
    %331 = vmatpush2.msra.mxu0 0.0
    %332 = vmatprep.subr.mxu0 0.0
    %333 = vmatpush2.msra.mxu0 0.0
    %334 = vmatprep.subr.mxu0 0.0
    %335 = vmatpush2.msra.mxu0 0.0
    %336 = vmatprep.subr.mxu0 0.0
    %337 = vmatpush2.msra.mxu0 0.0
    %338 = vmatprep.subr.mxu0 0.0
    %339 = vmatpush2.msra.mxu0 0.0
    %340 = vmatprep.subr.mxu0 0.0
    %341 = vmatpush2.msra.mxu0 0.0
    %342 = vmatprep.subr.mxu0 0.0
    %343 = vmatpush2.msra.mxu0 0.0
    %344 = vmatprep.subr.mxu0 0.0
    %345 = vmatpush2.msra.mxu0 0.0
    %346 = vmatprep.subr.mxu0 0.0
    %347 = vmatpush2.msra.mxu0 0.0
    %348 = vmatprep.subr.mxu0 0.0
    %349 = vmatpush2.msra.mxu0 0.0
    %350 = vmatprep.subr.mxu0 0.0
    %351 = vmatpush2.msra.mxu0 0.0
    %352 = vmatprep.mubr.f32.mxu0 0.0
    %353 = vmatmul.mubr.f32.gmra.mxu0 %v277
    %v354 = vpop.f32.mrf.mxu0
    %v355 = vadd.f32 %v258, %v354
    %v356 = vpop.f32.mrf.mxu0
    %v357 = vadd.f32 %v258, %v356
    %358 = vmatprep.mubr.f32.mxu0 0.0
    %359 = vmatmul.mubr.f32.gmra.mxu0 %v280
    %v360 = vpop.f32.mrf.mxu0
    %v361 = vadd.f32 %v263, %v360
    %v362 = vpop.f32.mrf.mxu0
    %v363 = vadd.f32 %v263, %v362
    %364 = vmatprep.mubr.f32.mxu0 0.0
    %365 = vmatmul.mubr.f32.gmra.mxu0 %v283
    %v366 = vpop.f32.mrf.mxu0
    %v367 = vadd.f32 %v268, %v366
    %v368 = vpop.f32.mrf.mxu0
    %v369 = vadd.f32 %v268, %v368
    %370 = vmatprep.mubr.f32.mxu0 0.0
    %371 = vmatmul.mubr.f32.gmra.mxu0 %v286
    %v372 = vpop.f32.mrf.mxu0
    %v373 = vadd.f32 %v273, %v372
    %v374 = vpop.f32.mrf.mxu0
    %v375 = vadd.f32 %v273, %v374
    %376 = vdwg.mxu0
    %v377 = vmax.f32 %v355, 0.0
    %v378 = vmax.f32 %v357, 0.0
    %v379 = vmax.f32 %v361, 0.0
    %v380 = vmax.f32 %v363, 0.0
    %v381 = vmax.f32 %v367, 0.0
    %v382 = vmax.f32 %v369, 0.0
    %v383 = vmax.f32 %v373, 0.0
    %v384 = vmax.f32 %v375, 0.0
    %v385 = vld [vmem:[%s5] sm:$0xff]
    %v386 = vld [vmem:[%s5 + $0x8] sm:$0xff]
    %v387 = vld [vmem:[%s6] sm:$0xff]
    %v388 = vld [vmem:[%s6 + $0x8] sm:$0xff]
    %390 = vset.pattern.permute.xlu0 0
    %391 = vperm.xlu0 %390, %v387
    %v392 = vpop.permute.xlu0 %391
    %395 = vset.pattern.permute.xlu0 0
    %396 = vperm.xlu0 %395, %v388
    %v397 = vpop.permute.xlu0 %396
    %vm399 = vcmask 261120
    %v401 = vsel %vm399, %v385, 0
    %v404 = vsel %vm399, %v386, 0
    %406 = vmatprep.subr.mxu0 0.0
    %407 = vmatpush1.msra.mxu0 0.0
    %408 = vmatprep.subr.mxu0 0.0
    %409 = vmatpush1.msra.mxu0 0.0
    %410 = vmatprep.subr.mxu0 0.0
    %411 = vmatpush1.msra.mxu0 0.0
    %412 = vmatprep.subr.mxu0 0.0
    %413 = vmatpush1.msra.mxu0 0.0
    %414 = vmatprep.subr.mxu0 0.0
    %415 = vmatpush1.msra.mxu0 0.0
    %416 = vmatprep.subr.mxu0 0.0
    %417 = vmatpush1.msra.mxu0 0.0
    %418 = vmatprep.subr.mxu0 0.0
    %419 = vmatpush1.msra.mxu0 0.0
    %420 = vmatprep.subr.mxu0 0.0
    %421 = vmatpush1.msra.mxu0 0.0
    %422 = vmatprep.subr.mxu0 0.0
    %423 = vmatpush1.msra.mxu0 0.0
    %424 = vmatprep.subr.mxu0 0.0
    %425 = vmatpush1.msra.mxu0 0.0
    %426 = vmatprep.subr.mxu0 0.0
    %427 = vmatpush1.msra.mxu0 0.0
    %428 = vmatprep.subr.mxu0 0.0
    %429 = vmatpush1.msra.mxu0 0.0
    %430 = vmatprep.subr.mxu0 %v384
    %431 = vmatpush1.msra.mxu0 %v383
    %432 = vmatprep.subr.mxu0 %v382
    %433 = vmatpush1.msra.mxu0 %v381
    %434 = vmatprep.subr.mxu0 %v380
    %435 = vmatpush1.msra.mxu0 %v379
    %436 = vmatprep.subr.mxu0 %v378
    %437 = vmatpush1.msra.mxu0 %v377
    %438 = vmatprep.subr.mxu0 0.0
    %439 = vmatpush2.msra.mxu0 0.0
    %440 = vmatprep.subr.mxu0 0.0
    %441 = vmatpush2.msra.mxu0 0.0
    %442 = vmatprep.subr.mxu0 0.0
    %443 = vmatpush2.msra.mxu0 0.0
    %444 = vmatprep.subr.mxu0 0.0
    %445 = vmatpush2.msra.mxu0 0.0
    %446 = vmatprep.subr.mxu0 0.0
    %447 = vmatpush2.msra.mxu0 0.0
    %448 = vmatprep.subr.mxu0 0.0
    %449 = vmatpush2.msra.mxu0 0.0
    %450 = vmatprep.subr.mxu0 0.0
    %451 = vmatpush2.msra.mxu0 0.0
    %452 = vmatprep.subr.mxu0 0.0
    %453 = vmatpush2.msra.mxu0 0.0
    %454 = vmatprep.subr.mxu0 0.0
    %455 = vmatpush2.msra.mxu0 0.0
    %456 = vmatprep.subr.mxu0 0.0
    %457 = vmatpush2.msra.mxu0 0.0
    %458 = vmatprep.subr.mxu0 0.0
    %459 = vmatpush2.msra.mxu0 0.0
    %460 = vmatprep.subr.mxu0 0.0
    %461 = vmatpush2.msra.mxu0 0.0
    %462 = vmatprep.subr.mxu0 0.0
    %463 = vmatpush2.msra.mxu0 0.0
    %464 = vmatprep.subr.mxu0 0.0
    %465 = vmatpush2.msra.mxu0 0.0
    %466 = vmatprep.subr.mxu0 0.0
    %467 = vmatpush2.msra.mxu0 0.0
    %468 = vmatprep.subr.mxu0 0.0
    %469 = vmatpush2.msra.mxu0 0.0
    %470 = vmatprep.mubr.f32.mxu0 0.0
    %471 = vmatmul.mubr.f32.gmra.mxu0 %v401
    %v472 = vpop.f32.mrf.mxu0
    %v473 = vadd.f32 %v392, %v472
    %v474 = vpop.f32.mrf.mxu0
    %v475 = vadd.f32 %v392, %v474
    %476 = vmatprep.mubr.f32.mxu0 0.0
    %477 = vmatmul.mubr.f32.gmra.mxu0 %v404
    %v478 = vpop.f32.mrf.mxu0
    %v479 = vadd.f32 %v397, %v478
    %v480 = vpop.f32.mrf.mxu0
    %v481 = vadd.f32 %v397, %v480
    %482 = vdwg.mxu0
    %v483 = vmax.f32 %v473, 0.0
    %v484 = vmax.f32 %v475, 0.0
    %v485 = vmax.f32 %v479, 0.0
    %v486 = vmax.f32 %v481, 0.0
    %v487 = vld [vmem:[%s7] sm:$0xff]
    %v488 = vld [vmem:[%s7 + $0x8] sm:$0xff]
    %490 = vset.pattern.permute.xlu0 0
    %491 = vperm.xlu0 %490, %v487
    %v492 = vpop.permute.xlu0 %491
    %495 = vset.pattern.permute.xlu0 0
    %496 = vperm.xlu0 %495, %v488
    %v497 = vpop.permute.xlu0 %496
    %v499 = vmul.f32 %v483, %v492
    %v500 = vmul.f32 %v484, %v492
    %v501 = vmul.f32 %v485, %v497
    %v502 = vmul.f32 %v486, %v497
    %v503 = vadd.f32 %v499, %v501
    %v504 = vrot.slane %v503, 4
    %v505 = vadd.f32 %v503, %v504
    %v506 = vrot.slane %v505, 2
    %v507 = vadd.f32 %v505, %v506
    %v508 = vrot.slane %v507, 1
    %v509 = vadd.f32 %v507, %v508
    %v510 = vadd.f32 %v500, %v502
    %v511 = vrot.slane %v510, 4
    %v512 = vadd.f32 %v510, %v511
    %v513 = vrot.slane %v512, 2
    %v514 = vadd.f32 %v512, %v513
    %v515 = vrot.slane %v514, 1
    %v516 = vadd.f32 %v514, %v515
    %v517 = vld [vmem:[#allocation2] sm:$0x1]
    %519 = vset.pattern.permute.xlu0 0
    %520 = vperm.xlu0 %519, %v517
    %v521 = vpop.permute.xlu0 %520
    %v523 = vlaneseq
    %v524 = vshrl.u32 %v523, 7
    %v525 = vsub.s32 0, %v524
    %v526 = vrot.slane %v521, %v525
    %v527 = vadd.f32 %v509, %v526
    %v528 = vadd.f32 %v516, %v526
    %v529 = vxor.u32 %v527, 2147483648
    %v530 = vxor.u32 %v528, 2147483648
    %v531 = vmul.f32 %v529, 1.442695
    %v532 = vpow.pop %v531
    %v533 = vmul.f32 %v530, 1.442695
    %v534 = vpow.pop %v533
    %v535 = vadd.f32 %v532, 1.0
    %v536 = vadd.f32 %v534, 1.0
    %v537 = vrcp.pop %v535
    %v538 = vmul.f32 1.0, %v537
    %v539 = vrcp.pop %v536
    %v540 = vmul.f32 1.0, %v539
    %v543 = vcombine.low %v538, %v540
    %v545 = vunpack.c.l.s4 1966171168
    %v546 = vunpack.c.0.s8 %v545
    %v547 = vlaneseq
    %v548 = vshrl.u32 %v547, 7
    %v549 = vsub.s32 %v546, %v548
    %v550 = vrot.slane %v543, %v549
    %v552 = vunpack.c.l.s4 1966171168
    %v553 = vunpack.c.0.s8 %v552
    %v554 = vlaneseq
    %v555 = vshrl.u32 %v554, 7
    %v556 = vsub.s32 %v553, %v555
    %v557 = vrot.slane %v550, %v556
    %v559 = vlaneseq
    %vm560 = vcmp.ge.s32.totalorder %v559, 0
    %vm561 = vcmp.lt.s32.totalorder %v559, 256
    %vm562 = vmand %vm560, %vm561
    %563 = vst.msk [vmem:[#allocation3] sm:$0x3] %vm562, %v557
    // Predicated region
    $region38: #{tpu_custom_call.1} parent=1 // pred_check
      _
    $region39: #{tpu_custom_call.1} parent=1 // pred_check_branch
      %565 = sbr.rel (0) target = $region41
    $region40: #{tpu_custom_call.1} parent=1 // pred_region
      %s567 = ssub.s32 32, 32
      %568 = vsyncadd [#allocation4], %s567
      %s570 = sshll.u32 [#allocation3], 4
      %s571 = int_to_ptr.vmem [resolvable:$true] %s570
      %573 = dma.vmem_to_hbm [thread:$0]  %s571, 32, %s9, [#allocation4]
    $region41: #{tpu_custom_call.1} parent=1 // pred_fallthru
      _
    // Predicated region
    $region42: #{tpu_custom_call.1} parent=1 // pred_check
      _
    $region43: #{tpu_custom_call.1} parent=1 // pred_check_branch
      %575 = sbr.rel (0) target = $region45
    $region44: #{tpu_custom_call.1} parent=1 // pred_region
      %576 = dma.done [#allocation4], 32
    $region45: #{tpu_custom_call.1} parent=1 // pred_fallthru
      _
    %577 = vsyncpa [#allocation4], 1

</llo_original>
